<compile_context>
chip_gen: v7x
topology: tpu7x:2x2x1
jax: 0.10.0
libtpu: 0.0.40
codegen_flags: <defaults>
</compile_context>

<pallas_src>
import functools
import math

import jax
import jax.numpy as jnp
from jax.experimental import pallas as pl
from jax.experimental.pallas import tpu as pltpu


def _gcn_kernel(adj_ref, h_ref, w_ref, b_ref, out_ref, *, tile_k):
    k = pl.program_id(1)

    @pl.when(k == 0)
    def _init():
        out_ref[...] = jnp.zeros_like(out_ref)

    # Transform this K slab of node features: X_k = h[k*K:(k+1)*K, :] @ W.
    # h_ref holds the full (N, D) feature matrix resident in VMEM.
    row0 = pl.multiple_of(k * tile_k, tile_k)
    x_k = jnp.dot(
        h_ref[pl.ds(row0, tile_k), :],
        w_ref[...],
        preferred_element_type=jnp.float32,
    )

    # Aggregate over neighbours; accumulate straight into the lane-dense
    # (tile_n, F) f32 output block (acts as the accumulator across K).
    out_ref[...] += jnp.dot(
        adj_ref[...], x_k, preferred_element_type=jnp.float32
    )

    @pl.when(k == pl.num_programs(1) - 1)
    def _finalize():
        # Bias + ReLU epilogue (f32, single lane-dense store).
        out_ref[...] = jnp.maximum(out_ref[...] + b_ref[...], 0.0)


def gcn_layer_forward(adj, h, W, b, *, tile_n=256, tile_k=2048):
    """Fused GCN layer: relu(adj @ (h @ W) + b)."""
    N, D = h.shape
    D2, F = W.shape
    assert D2 == D
    assert adj.shape == (N, N)
    assert b.shape == (F,)

    # ---- tile selection (perf review) -------------------------------------
    # Large K tiles amortize the ~0.35us per-grid-step overhead; clamp to N
    # (K axis collapses to a single step for small graphs).
    tile_k = min(tile_k, N)
    tile_n = min(tile_n, N)
    # Keep >= 2 row tiles when N allows so the "parallel" row axis shards
    # across both TensorCores on v7x.
    if tile_n == N and N % 2 == 0 and (N // 2) % 8 == 0:
        tile_n = N // 2
    # TODO(synk): pad N/D/F in the wrapper when they are not tile/lane aligned
    # instead of asserting.
    assert N % tile_n == 0 and N % tile_k == 0
    assert tile_n % 8 == 0 or tile_n == N
    assert tile_k % 128 == 0 or tile_k == N

    grid = (N // tile_n, N // tile_k)

    kernel = functools.partial(_gcn_kernel, tile_k=tile_k)

    return pl.pallas_call(
        kernel,
        out_shape=jax.ShapeDtypeStruct((N, F), jnp.float32),
        grid_spec=pltpu.PrefetchScalarGridSpec(
            num_scalar_prefetch=0,
            grid=grid,
            in_specs=[
                # adj row/column tile: the only operand streamed every step.
                pl.BlockSpec((tile_n, tile_k), lambda i, k: (i, k)),
                # full h, VMEM-resident (constant block index -> single DMA).
                pl.BlockSpec((N, D), lambda i, k: (0, 0)),
                # full W, resident.
                pl.BlockSpec((D, F), lambda i, k: (0, 0)),
                # bias, resident.
                pl.BlockSpec((1, F), lambda i, k: (0, 0)),
            ],
            # Output block is constant across K -> resident accumulator.
            out_specs=pl.BlockSpec((tile_n, F), lambda i, k: (i, 0)),
        ),
        compiler_params=pltpu.CompilerParams(
            dimension_semantics=("parallel", "arbitrary"),
            vmem_limit_bytes=48 * 1024 * 1024,
        ),
    )(
        adj.astype(jnp.float32),
        h.astype(jnp.float32),
        W.astype(jnp.float32),
        b.reshape(1, F).astype(jnp.float32),
    )


def reference_forward(adj, h, W, b):
    x = h @ W
    x = adj @ x
    x = x + b
    return jnp.maximum(x, 0.0)


if __name__ == "__main__":
    # Small, deterministic shapes consistent with the module.
    N = 256   # number of graph nodes
    D = 64    # input_dim
    F = 128   # output_dim

    key = jax.random.PRNGKey(0)
    k_adj, k_h, k_w = jax.random.split(key, 3)

    # Symmetric row-normalized random adjacency (dense).
    a = jax.random.uniform(k_adj, (N, N), dtype=jnp.float32)
    a = (a + a.T) * 0.5
    adj = a / jnp.sum(a, axis=1, keepdims=True)

    # Node features.
    h = jax.random.normal(k_h, (N, D), dtype=jnp.float32)

    # Xavier-uniform weight init (matches nn.init.xavier_uniform_), zero bias
    # (matches init_params).  dropout=0 path; activation = ReLU.
    bound = math.sqrt(6.0 / (D + F))
    W = jax.random.uniform(
        k_w, (D, F), minval=-bound, maxval=bound, dtype=jnp.float32
    )
    b = jnp.zeros((F,), dtype=jnp.float32)

    out = jax.block_until_ready(gcn_layer_forward(adj, h, W, b))

    ref = reference_forward(adj, h, W, b)
    assert out.shape == (N, F)
    # All-f32 data path (MXU f32 accumulation); tolerance only covers the
    # backend's default matmul precision in the XLA reference.
    assert jnp.allclose(out, ref, atol=1e-2, rtol=1e-2), "mismatch vs reference"

    print("KERNEL_OK")
</pallas_src>

<mosaic_0001>
module attributes {stable_mosaic.version = 11 : i64} {
  func.func @_gcn_kernel(%arg0: i32, %arg1: i32, %arg2: memref<128x256xf32, #tpu.memory_space<vmem>>, %arg3: memref<256x64xf32, #tpu.memory_space<vmem>>, %arg4: memref<64x128xf32, #tpu.memory_space<vmem>>, %arg5: memref<1x128xf32, #tpu.memory_space<vmem>>, %arg6: memref<128x128xf32, #tpu.memory_space<vmem>>) attributes {dimension_semantics = [#tpu.dimension_semantics<parallel>, #tpu.dimension_semantics<arbitrary>], iteration_bounds = array<i64: 2, 1>, scalar_prefetch = 0 : i64, scratch_operands = 0 : i64, tpu.core_type = #tpu.core_type<tc>, window_params = [{transform_indices = @transform_0, window_bounds = array<i64: 128, 256>}, {pipeline_mode = #tpu.pipeline_mode<synchronous>, transform_indices = @transform_1, window_bounds = array<i64: 256, 64>}, {pipeline_mode = #tpu.pipeline_mode<synchronous>, transform_indices = @transform_2, window_bounds = array<i64: 64, 128>}, {pipeline_mode = #tpu.pipeline_mode<synchronous>, transform_indices = @transform_3, window_bounds = array<i64: 1, 128>}, {transform_indices = @transform_4, window_bounds = array<i64: 128, 128>}]} {
    %c0_i32 = arith.constant 0 : i32
    %0 = arith.cmpi eq, %arg1, %c0_i32 : i32
    %1 = arith.extui %0 : i1 to i32
    %c0_i32_0 = arith.constant 0 : i32
    %2 = arith.cmpi ne, %1, %c0_i32_0 : i32
    scf.if %2 {
      %cst_12 = arith.constant 0.000000e+00 : f32
      %17 = vector.broadcast %cst_12 : f32 to vector<128x128xf32>
      %c0_13 = arith.constant 0 : index
      %c0_14 = arith.constant 0 : index
      %18 = vector.load %arg6[%c0_13, %c0_14] : memref<128x128xf32, #tpu.memory_space<vmem>>, vector<128x128xf32>
      tpu.vector_store %arg6[%c0_13, %c0_14], %17 {strides = array<i32>} : memref<128x128xf32, #tpu.memory_space<vmem>>, vector<128x128xf32>,
    } else {
    }
    %c256_i32 = arith.constant 256 : i32
    %3 = arith.muli %arg1, %c256_i32 : i32
    %4 = tpu.assume_multiple %3, 256 : i32
    %5 = arith.index_cast %4 : i32 to index
    %c0 = arith.constant 0 : index
    %6 = vector.load %arg3[%5, %c0] : memref<256x64xf32, #tpu.memory_space<vmem>>, vector<256x64xf32>
    %c0_1 = arith.constant 0 : index
    %c0_2 = arith.constant 0 : index
    %7 = vector.load %arg4[%c0_1, %c0_2] : memref<64x128xf32, #tpu.memory_space<vmem>>, vector<64x128xf32>
    %cst = arith.constant dense<0.000000e+00> : vector<256x128xf32>
    %8 = tpu.matmul %6, %7, %cst {dimension_numbers = #tpu.dot_dimension_numbers<[1], [0], [0], [1], [0, 0, 1, 1], [], []>} : vector<256x64xf32>, vector<64x128xf32>, vector<256x128xf32> -> vector<256x128xf32>
    %c0_3 = arith.constant 0 : index
    %c0_4 = arith.constant 0 : index
    %9 = vector.load %arg6[%c0_3, %c0_4] : memref<128x128xf32, #tpu.memory_space<vmem>>, vector<128x128xf32>
    %c0_5 = arith.constant 0 : index
    %c0_6 = arith.constant 0 : index
    %10 = vector.load %arg2[%c0_5, %c0_6] : memref<128x256xf32, #tpu.memory_space<vmem>>, vector<128x256xf32>
    %cst_7 = arith.constant dense<0.000000e+00> : vector<128x128xf32>
    %11 = tpu.matmul %10, %8, %cst_7 {dimension_numbers = #tpu.dot_dimension_numbers<[1], [0], [0], [1], [0, 0, 1, 1], [], []>} : vector<128x256xf32>, vector<256x128xf32>, vector<128x128xf32> -> vector<128x128xf32>
    %12 = arith.addf %9, %11 : vector<128x128xf32>
    %c0_8 = arith.constant 0 : index
    %c0_9 = arith.constant 0 : index
    %13 = vector.load %arg6[%c0_8, %c0_9] : memref<128x128xf32, #tpu.memory_space<vmem>>, vector<128x128xf32>
    tpu.vector_store %arg6[%c0_8, %c0_9], %12 {strides = array<i32>} : memref<128x128xf32, #tpu.memory_space<vmem>>, vector<128x128xf32>,
    %c0_i32_10 = arith.constant 0 : i32
    %14 = arith.cmpi eq, %arg1, %c0_i32_10 : i32
    %15 = arith.extui %14 : i1 to i32
    %c0_i32_11 = arith.constant 0 : i32
    %16 = arith.cmpi ne, %15, %c0_i32_11 : i32
    scf.if %16 {
      %c0_12 = arith.constant 0 : index
      %c0_13 = arith.constant 0 : index
      %17 = vector.load %arg6[%c0_12, %c0_13] : memref<128x128xf32, #tpu.memory_space<vmem>>, vector<128x128xf32>
      %c0_14 = arith.constant 0 : index
      %c0_15 = arith.constant 0 : index
      %18 = vector.load %arg5[%c0_14, %c0_15] : memref<1x128xf32, #tpu.memory_space<vmem>>, vector<1x128xf32>
      %19 = vector.broadcast %18 : vector<1x128xf32> to vector<128x128xf32>
      %20 = arith.addf %17, %19 : vector<128x128xf32>
      %cst_16 = arith.constant 0.000000e+00 : f32
      %21 = vector.broadcast %cst_16 : f32 to vector<128x128xf32>
      %22 = arith.maximumf %20, %21 : vector<128x128xf32>
      %c0_17 = arith.constant 0 : index
      %c0_18 = arith.constant 0 : index
      %23 = vector.load %arg6[%c0_17, %c0_18] : memref<128x128xf32, #tpu.memory_space<vmem>>, vector<128x128xf32>
      tpu.vector_store %arg6[%c0_17, %c0_18], %22 {strides = array<i32>} : memref<128x128xf32, #tpu.memory_space<vmem>>, vector<128x128xf32>,
    } else {
    }
    return
  }
  func.func @transform_0(%arg0: i32, %arg1: i32) -> (i32, i32) {
    %c0_i32 = arith.constant 0 : i32
    return %arg0, %arg1 : i32, i32
  }
  func.func @transform_1(%arg0: i32, %arg1: i32) -> (i32, i32) {
    %c0_i32 = arith.constant 0 : i32
    %c0_i32_0 = arith.constant 0 : i32
    %c0_i32_1 = arith.constant 0 : i32
    return %c0_i32, %c0_i32_0 : i32, i32
  }
  func.func @transform_2(%arg0: i32, %arg1: i32) -> (i32, i32) {
    %c0_i32 = arith.constant 0 : i32
    %c0_i32_0 = arith.constant 0 : i32
    %c0_i32_1 = arith.constant 0 : i32
    return %c0_i32, %c0_i32_0 : i32, i32
  }
  func.func @transform_3(%arg0: i32, %arg1: i32) -> (i32, i32) {
    %c0_i32 = arith.constant 0 : i32
    %c0_i32_0 = arith.constant 0 : i32
    %c0_i32_1 = arith.constant 0 : i32
    return %c0_i32, %c0_i32_0 : i32, i32
  }
  func.func @transform_4(%arg0: i32, %arg1: i32) -> (i32, i32) {
    %c0_i32 = arith.constant 0 : i32
    %c0_i32_0 = arith.constant 0 : i32
    return %arg0, %c0_i32 : i32, i32
  }
}

</mosaic_0001>

<llo_original>
// kernel: tpu_custom_call.1
$region0: #{tpu_custom_call.1}
  #allocation0 [shape = 'u32[]', space=smem, size = 0x4, offset = 0x4, fixed_abs, tag = 'smem constant byte address 0x4 - core index']
  #allocation1 [shape = 'u32[144,128]{1,0:T(1,128)}', space=vmem, size = 0x12000, scoped, tag = 'internal scratch']
  %s0 = inlined_call_operand.hbm [shape: f32[256,256], index: 0, kind: input, shape index: {}]
  %s1 = inlined_call_operand.vmem [shape: f32[256,64], index: 1, kind: input, shape index: {}]
  %s2 = inlined_call_operand.vmem [shape: f32[64,128], index: 2, kind: input, shape index: {}]
  %s3 = inlined_call_operand.vmem [shape: f32[1,128], index: 3, kind: input, shape index: {}]
  %s4 = inlined_call_operand.hbm [shape: f32[256,128], index: 4, kind: output, shape index: {}]
  %s5 = sld [smem:[#allocation0]]
  $region61: #{tpu_custom_call.1} parent=0
    _
  %s7 = ssub.s32 1, %s5
  %s8 = scalar_select 0, %s7, %s5
  $region1: #{tpu_custom_call.1} parent=0
    #allocation2 [shape = 'u8[262144]{0}', space=vmem, size = 0x40000, scoped, tag = 'input window, operand 0']
    #allocation3 [shape = 's32[2]{0}', space=sflag, size = 0x8, scoped, tag = 'scoped memory for tpu_custom_call.1']
    #allocation4 [shape = 's32[2]{0}', space=sflag, size = 0x8, scoped, tag = 'scoped memory for tpu_custom_call.1']
    #allocation5 [shape = 'u8[131072]{0}', space=vmem, size = 0x20000, scoped, tag = 'output window, operand 0']
    %9 = vsyncpa [#allocation3], 0
    %s10 = scalar_lea.sflag [#allocation3], 1
    %11 = vsyncpa %s10, 0
    %12 = vsyncpa [#allocation4], 0
    %s13 = scalar_lea.sflag [#allocation4], 1
    %14 = vsyncpa %s13, 0
    loop: start=0, step=1, limit=4
    $region2: #{tpu_custom_call.1} parent=1 // loop_pre_header
      _
    $region3: #{tpu_custom_call.1} parent=1 // loop_header
      %s16 = sphi 0, %s20
      %p17 = scmp.ge.s32.totalorder %s16, 4
      %s23 = sphi 0, %s35
      %s24 = sphi 0, %s31
      %s25 = sphi 0, %s23
      %s26 = sphi 0, %s24
      %s27 = sphi 0, %s25
      %s28 = sphi 0, %s26
      %s40 = sphi 0, %s42
      %s43 = sphi 0, %s40
      %s44 = sphi 0, %s43
      %s60 = sphi 0, %s44
      %s64 = sphi 0, %s64
      %s66 = sphi 0, %s64
      %s67 = sphi 0, %s66
      %s81 = sphi 0, %s67
      %s85 = sphi 0, %s85
      %s87 = sphi 0, %s85
      %s88 = sphi 0, %s87
      %s102 = sphi 0, %s88
      %s106 = sphi 0, %s106
      %s108 = sphi 0, %s106
      %s109 = sphi 0, %s108
      %s123 = sphi 0, %s109
      %s129 = sphi 0, %s131
      %s132 = sphi 0, %s129
      %s133 = sphi 0, %s132
      %s149 = sphi 0, %s133
    $region4: #{tpu_custom_call.1} parent=1 // loop_header_branch
      %19 = sbr.rel (%p17) target = $region8
    $region5: #{tpu_custom_call.1} parent=1 // loop_body
      %s21 = ssub.s32 %s16, 1
      %s22 = ssub.s32 %s16, 2
      %s29 = sadd.s32 1, %s24
      %p30 = scmp.ge.s32.totalorder %s29, 1
      %s31 = scalar_select %p30, 0, %s29
      %s32 = sadd.s32 1, %s23
      %s33 = scalar_select %p30, %s32, %s23
      %p34 = scmp.ge.s32.totalorder %s33, 2
      %s35 = scalar_select %p34, 0, %s33
      %s36 = ssub.s32 %s23, %s35
      %s37 = ssub.s32 %s24, %s31
      %s38 = sor.u32 %s36, %s37
      %p39 = scmp.eq.s32.totalorder %s38, 0
      %s41 = sadd.s32 %s40, 1
      %s42 = scalar_select %p39, %s40, %s41
      %p45 = pneg %p39
      %p46 = scmp.eq.s32.totalorder %s16, 1
      %p47 = por %p45, %p46
      %p48 = scmp.ne.s32.totalorder %s40, %s43
      %p49 = scmp.eq.s32.totalorder %s16, 0
      %p50 = por %p48, %p49
      %p51 = scmp.ne.s32.totalorder %s40, %s43
      %p52 = scmp.eq.s32.totalorder %s21, 1
      %p53 = por %p51, %p52
      %p54 = scmp.ne.s32.totalorder %s43, %s44
      %p55 = scmp.eq.s32.totalorder %s21, 0
      %p56 = por %p54, %p55
      %p57 = scmp.ne.s32.totalorder %s43, %s44
      %p58 = scmp.eq.s32.totalorder %s22, 1
      %p59 = por %p57, %p58
      %p61 = scmp.ne.s32.totalorder %s44, %s60
      %p62 = scmp.eq.s32.totalorder %s22, 0
      %p63 = por %p61, %p62
      %s65 = sadd.s32 %s64, 1
      %p68 = scmp.eq.s32.totalorder %s16, 1
      %p69 = scmp.ne.s32.totalorder %s64, %s66
      %p70 = scmp.eq.s32.totalorder %s16, 0
      %p71 = por %p69, %p70
      %p72 = scmp.ne.s32.totalorder %s64, %s66
      %p73 = scmp.eq.s32.totalorder %s21, 1
      %p74 = por %p72, %p73
      %p75 = scmp.ne.s32.totalorder %s66, %s67
      %p76 = scmp.eq.s32.totalorder %s21, 0
      %p77 = por %p75, %p76
      %p78 = scmp.ne.s32.totalorder %s66, %s67
      %p79 = scmp.eq.s32.totalorder %s22, 1
      %p80 = por %p78, %p79
      %p82 = scmp.ne.s32.totalorder %s67, %s81
      %p83 = scmp.eq.s32.totalorder %s22, 0
      %p84 = por %p82, %p83
      %s86 = sadd.s32 %s85, 1
      %p89 = scmp.eq.s32.totalorder %s16, 1
      %p90 = scmp.ne.s32.totalorder %s85, %s87
      %p91 = scmp.eq.s32.totalorder %s16, 0
      %p92 = por %p90, %p91
      %p93 = scmp.ne.s32.totalorder %s85, %s87
      %p94 = scmp.eq.s32.totalorder %s21, 1
      %p95 = por %p93, %p94
      %p96 = scmp.ne.s32.totalorder %s87, %s88
      %p97 = scmp.eq.s32.totalorder %s21, 0
      %p98 = por %p96, %p97
      %p99 = scmp.ne.s32.totalorder %s87, %s88
      %p100 = scmp.eq.s32.totalorder %s22, 1
      %p101 = por %p99, %p100
      %p103 = scmp.ne.s32.totalorder %s88, %s102
      %p104 = scmp.eq.s32.totalorder %s22, 0
      %p105 = por %p103, %p104
      %s107 = sadd.s32 %s106, 1
      %p110 = scmp.eq.s32.totalorder %s16, 1
      %p111 = scmp.ne.s32.totalorder %s106, %s108
      %p112 = scmp.eq.s32.totalorder %s16, 0
      %p113 = por %p111, %p112
      %p114 = scmp.ne.s32.totalorder %s106, %s108
      %p115 = scmp.eq.s32.totalorder %s21, 1
      %p116 = por %p114, %p115
      %p117 = scmp.ne.s32.totalorder %s108, %s109
      %p118 = scmp.eq.s32.totalorder %s21, 0
      %p119 = por %p117, %p118
      %p120 = scmp.ne.s32.totalorder %s108, %s109
      %p121 = scmp.eq.s32.totalorder %s22, 1
      %p122 = por %p120, %p121
      %p124 = scmp.ne.s32.totalorder %s109, %s123
      %p125 = scmp.eq.s32.totalorder %s22, 0
      %p126 = por %p124, %p125
      %s127 = ssub.s32 %s23, %s35
      %p128 = scmp.eq.s32.totalorder %s127, 0
      %s130 = sadd.s32 %s129, 1
      %s131 = scalar_select %p128, %s129, %s130
      %p134 = pneg %p128
      %p135 = scmp.eq.s32.totalorder %s16, 1
      %p136 = por %p134, %p135
      %p137 = scmp.ne.s32.totalorder %s129, %s132
      %p138 = scmp.eq.s32.totalorder %s16, 0
      %p139 = por %p137, %p138
      %p140 = scmp.ne.s32.totalorder %s129, %s132
      %p141 = scmp.eq.s32.totalorder %s21, 1
      %p142 = por %p140, %p141
      %p143 = scmp.ne.s32.totalorder %s132, %s133
      %p144 = scmp.eq.s32.totalorder %s21, 0
      %p145 = por %p143, %p144
      %p146 = scmp.ne.s32.totalorder %s132, %s133
      %p147 = scmp.eq.s32.totalorder %s22, 1
      %p148 = por %p146, %p147
      %p150 = scmp.ne.s32.totalorder %s133, %s149
      %p151 = scmp.eq.s32.totalorder %s22, 0
      %p152 = por %p150, %p151
      %p153 = scmp.le.s32.totalorder 1, %s16
      %p154 = scmp.lt.s32.totalorder %s16, 3
      %p155 = pnand %p153, %p154
      %p156 = pneg %p155
      // Predicated region
      $region9: #{tpu_custom_call.1} parent=5 // pred_check
        _
      $region10: #{tpu_custom_call.1} parent=5 // pred_check_branch
        %158 = sbr.rel (%p155) target = $region12
      $region11: #{tpu_custom_call.1} parent=5 // pred_region
        %s159 = ssub.s32 %s16, 1
        // Predicated region
        $region13: #{tpu_custom_call.1} parent=11 // pred_check
          %p160 = pneg %p77
        $region14: #{tpu_custom_call.1} parent=11 // pred_check_branch
          %162 = sbr.rel (%p160) target = $region16
        $region15: #{tpu_custom_call.1} parent=11 // pred_region
          _
        $region16: #{tpu_custom_call.1} parent=11 // pred_fallthru
          _
        // Predicated region
        $region17: #{tpu_custom_call.1} parent=11 // pred_check
          %p163 = pneg %p98
        $region18: #{tpu_custom_call.1} parent=11 // pred_check_branch
          %165 = sbr.rel (%p163) target = $region20
        $region19: #{tpu_custom_call.1} parent=11 // pred_region
          _
        $region20: #{tpu_custom_call.1} parent=11 // pred_fallthru
          _
        // Predicated region
        $region21: #{tpu_custom_call.1} parent=11 // pred_check
          %p166 = pneg %p119
        $region22: #{tpu_custom_call.1} parent=11 // pred_check_branch
          %168 = sbr.rel (%p166) target = $region24
        $region23: #{tpu_custom_call.1} parent=11 // pred_region
          _
        $region24: #{tpu_custom_call.1} parent=11 // pred_fallthru
          _
      $region12: #{tpu_custom_call.1} parent=5 // pred_fallthru
        _
      %p169 = scmp.lt.s32.totalorder %s16, 2
      // Predicated region
      $region25: #{tpu_custom_call.1} parent=5 // pred_check
        %p170 = pneg %p169
      $region26: #{tpu_custom_call.1} parent=5 // pred_check_branch
        %172 = sbr.rel (%p170) target = $region28
      $region27: #{tpu_custom_call.1} parent=5 // pred_region
        // Predicated region
        $region29: #{tpu_custom_call.1} parent=27 // pred_check
          %p173 = pneg %p50
        $region30: #{tpu_custom_call.1} parent=27 // pred_check_branch
          %175 = sbr.rel (%p173) target = $region32
        $region31: #{tpu_custom_call.1} parent=27 // pred_region
          %s176 = sand.u32 %s40, 1
          %s177 = scalar_lea.sflag [#allocation3], %s176
          %s178 = sand.u32 %s40, 1
          %s179 = smul.addr %s178, 256
          %s180 = scalar_lea.vmem [#allocation2], %s179
          %s181 = smul.u32 16, %s23
          %s182 = smul.u32 2, %s24
          %s184 = ssub.s32 4096, 4096
          %185 = vsyncadd %s177, %s184
          %s186 = smul.addr %s181, 2
          %s187 = sadd.s32 %s182, %s186
          %s188 = smul.addr %s187, 128
          %s189 = scalar_lea.hbm %s0, %s188
          %s190 = sshll.u32 %s180, 4
          %s191 = int_to_ptr.vmem [resolvable:$true] %s190
          %196 = dma.hbm_to_vmem [thread:$0]  %s189, 4096, %s191, %s177, 256, 256, 16
        $region32: #{tpu_custom_call.1} parent=27 // pred_fallthru
          _
      $region28: #{tpu_custom_call.1} parent=5 // pred_fallthru
        _
      %p197 = scmp.le.s32.totalorder 1, %s16
      %p198 = scmp.lt.s32.totalorder %s16, 3
      %p199 = pnand %p197, %p198
      %p200 = pneg %p199
      // Predicated region
      $region33: #{tpu_custom_call.1} parent=5 // pred_check
        _
      $region34: #{tpu_custom_call.1} parent=5 // pred_check_branch
        %202 = sbr.rel (%p199) target = $region36
      $region35: #{tpu_custom_call.1} parent=5 // pred_region
        %s203 = ssub.s32 %s16, 1
        %s204 = sand.u32 %s43, 1
        %s205 = scalar_lea.sflag [#allocation3], %s204
        %s206 = sand.u32 %s43, 1
        %s207 = smul.addr %s206, 256
        %s208 = scalar_lea.vmem [#allocation2], %s207
        // Predicated region
        $region37: #{tpu_custom_call.1} parent=35 // pred_check
          %p209 = pneg %p56
        $region38: #{tpu_custom_call.1} parent=35 // pred_check_branch
          %211 = sbr.rel (%p209) target = $region40
        $region39: #{tpu_custom_call.1} parent=35 // pred_region
          %212 = dma.done %s205, 4096
        $region40: #{tpu_custom_call.1} parent=35 // pred_fallthru
          _
        %s213 = sand.u32 %s43, 1
        %s214 = scalar_lea.sflag [#allocation3], %s213
        %s215 = sand.u32 %s43, 1
        %s216 = smul.addr %s215, 256
        %s217 = scalar_lea.vmem [#allocation2], %s216
        %p218 = pneg %p56
        %p219 = pneg %p53
        %p220 = pneg %p77
        %p221 = pneg %p74
        %p222 = pneg %p98
        %p223 = pneg %p95
        %p224 = pneg %p119
        %p225 = pneg %p116
        %p226 = pneg %p145
        %p227 = pneg %p142
        %s228 = sand.u32 %s132, 1
        %s229 = scalar_lea.sflag [#allocation4], %s228
        %s230 = sand.u32 %s132, 1
        %s231 = smul.addr %s230, 128
        %s232 = scalar_lea.vmem [#allocation5], %s231
        %s233 = smul.u32 16, %s25
        %s234 = smul.u32 2, %s26
        %s235 = smul.u32 16, %s25
        %p236 = scmp.eq.s32.totalorder %s26, 0
        // Predicated region
        $region41: #{tpu_custom_call.1} parent=35 // pred_check
          %p237 = pneg %p236
        $region42: #{tpu_custom_call.1} parent=35 // pred_check_branch
          %239 = sbr.rel (%p237) target = $region44
        $region43: #{tpu_custom_call.1} parent=35 // pred_region
          %240 = vst [vmem:[%s232] sm:$0xff] 0.0
          %241 = vst [vmem:[%s232 + $0x8] sm:$0xff] 0.0
          %242 = vst [vmem:[%s232 + $0x10] sm:$0xff] 0.0
          %243 = vst [vmem:[%s232 + $0x18] sm:$0xff] 0.0
          %244 = vst [vmem:[%s232 + $0x20] sm:$0xff] 0.0
          %245 = vst [vmem:[%s232 + $0x28] sm:$0xff] 0.0
          %246 = vst [vmem:[%s232 + $0x30] sm:$0xff] 0.0
          %247 = vst [vmem:[%s232 + $0x38] sm:$0xff] 0.0
          %248 = vst [vmem:[%s232 + $0x40] sm:$0xff] 0.0
          %249 = vst [vmem:[%s232 + $0x48] sm:$0xff] 0.0
          %250 = vst [vmem:[%s232 + $0x50] sm:$0xff] 0.0
          %251 = vst [vmem:[%s232 + $0x58] sm:$0xff] 0.0
          %252 = vst [vmem:[%s232 + $0x60] sm:$0xff] 0.0
          %253 = vst [vmem:[%s232 + $0x68] sm:$0xff] 0.0
          %254 = vst [vmem:[%s232 + $0x70] sm:$0xff] 0.0
          %255 = vst [vmem:[%s232 + $0x78] sm:$0xff] 0.0
        $region44: #{tpu_custom_call.1} parent=35 // pred_fallthru
          _
        %s256 = smul.u32 %s26, 256
        %s257 = scalar_lea.vmem %s1, %s256
        %v258 = vld [vmem:[%s257] sm:$0xff]
        %v259 = vld [vmem:[%s257 + $0x8] sm:$0xff]
        %v260 = vld [vmem:[%s257 + $0x10] sm:$0xff]
        %v261 = vld [vmem:[%s257 + $0x18] sm:$0xff]
        %v262 = vld [vmem:[%s257 + $0x20] sm:$0xff]
        %v263 = vld [vmem:[%s257 + $0x28] sm:$0xff]
        %v264 = vld [vmem:[%s257 + $0x30] sm:$0xff]
        %v265 = vld [vmem:[%s257 + $0x38] sm:$0xff]
        %v266 = vld [vmem:[%s257 + $0x40] sm:$0xff]
        %v267 = vld [vmem:[%s257 + $0x48] sm:$0xff]
        %v268 = vld [vmem:[%s257 + $0x50] sm:$0xff]
        %v269 = vld [vmem:[%s257 + $0x58] sm:$0xff]
        %v270 = vld [vmem:[%s257 + $0x60] sm:$0xff]
        %v271 = vld [vmem:[%s257 + $0x68] sm:$0xff]
        %v272 = vld [vmem:[%s257 + $0x70] sm:$0xff]
        %v273 = vld [vmem:[%s257 + $0x78] sm:$0xff]
        %v274 = vld [vmem:[%s257 + $0x80] sm:$0xff]
        %v275 = vld [vmem:[%s257 + $0x88] sm:$0xff]
        %v276 = vld [vmem:[%s257 + $0x90] sm:$0xff]
        %v277 = vld [vmem:[%s257 + $0x98] sm:$0xff]
        %v278 = vld [vmem:[%s257 + $0xa0] sm:$0xff]
        %v279 = vld [vmem:[%s257 + $0xa8] sm:$0xff]
        %v280 = vld [vmem:[%s257 + $0xb0] sm:$0xff]
        %v281 = vld [vmem:[%s257 + $0xb8] sm:$0xff]
        %v282 = vld [vmem:[%s257 + $0xc0] sm:$0xff]
        %v283 = vld [vmem:[%s257 + $0xc8] sm:$0xff]
        %v284 = vld [vmem:[%s257 + $0xd0] sm:$0xff]
        %v285 = vld [vmem:[%s257 + $0xd8] sm:$0xff]
        %v286 = vld [vmem:[%s257 + $0xe0] sm:$0xff]
        %v287 = vld [vmem:[%s257 + $0xe8] sm:$0xff]
        %v288 = vld [vmem:[%s257 + $0xf0] sm:$0xff]
        %v289 = vld [vmem:[%s257 + $0xf8] sm:$0xff]
        %v290 = vld [vmem:[%s2] sm:$0xff]
        %v291 = vld [vmem:[%s2 + $0x8] sm:$0xff]
        %v292 = vld [vmem:[%s2 + $0x10] sm:$0xff]
        %v293 = vld [vmem:[%s2 + $0x18] sm:$0xff]
        %v294 = vld [vmem:[%s2 + $0x20] sm:$0xff]
        %v295 = vld [vmem:[%s2 + $0x28] sm:$0xff]
        %v296 = vld [vmem:[%s2 + $0x30] sm:$0xff]
        %v297 = vld [vmem:[%s2 + $0x38] sm:$0xff]
        %vm298 = vcmask 523264
        %v300 = vsel %vm298, %v258, 0
        %v303 = vsel %vm298, %v259, 0
        %v306 = vsel %vm298, %v260, 0
        %v309 = vsel %vm298, %v261, 0
        %v312 = vsel %vm298, %v262, 0
        %v315 = vsel %vm298, %v263, 0
        %v318 = vsel %vm298, %v264, 0
        %v321 = vsel %vm298, %v265, 0
        %v324 = vsel %vm298, %v266, 0
        %v327 = vsel %vm298, %v267, 0
        %v330 = vsel %vm298, %v268, 0
        %v333 = vsel %vm298, %v269, 0
        %v336 = vsel %vm298, %v270, 0
        %v339 = vsel %vm298, %v271, 0
        %v342 = vsel %vm298, %v272, 0
        %v345 = vsel %vm298, %v273, 0
        %v348 = vsel %vm298, %v274, 0
        %v351 = vsel %vm298, %v275, 0
        %v354 = vsel %vm298, %v276, 0
        %v357 = vsel %vm298, %v277, 0
        %v360 = vsel %vm298, %v278, 0
        %v363 = vsel %vm298, %v279, 0
        %v366 = vsel %vm298, %v280, 0
        %v369 = vsel %vm298, %v281, 0
        %v372 = vsel %vm298, %v282, 0
        %v375 = vsel %vm298, %v283, 0
        %v378 = vsel %vm298, %v284, 0
        %v381 = vsel %vm298, %v285, 0
        %v384 = vsel %vm298, %v286, 0
        %v387 = vsel %vm298, %v287, 0
        %v390 = vsel %vm298, %v288, 0
        %v393 = vsel %vm298, %v289, 0
        %395 = vmatprep.subr.mxu0 0.0
        %396 = vmatpush1.msra.mxu0 %v290
        %397 = vmatprep.subr.mxu0 0.0
        %398 = vmatpush1.msra.mxu0 %v291
        %399 = vmatprep.subr.mxu0 0.0
        %400 = vmatpush1.msra.mxu0 %v292
        %401 = vmatprep.subr.mxu0 0.0
        %402 = vmatpush1.msra.mxu0 %v293
        %403 = vmatprep.subr.mxu0 0.0
        %404 = vmatpush1.msra.mxu0 %v294
        %405 = vmatprep.subr.mxu0 0.0
        %406 = vmatpush1.msra.mxu0 %v295
        %407 = vmatprep.subr.mxu0 0.0
        %408 = vmatpush1.msra.mxu0 %v296
        %409 = vmatprep.subr.mxu0 0.0
        %410 = vmatpush1.msra.mxu0 %v297
        %411 = vmatprep.subr.mxu0 0.0
        %412 = vmatpush1.msra.mxu0 0.0
        %413 = vmatprep.subr.mxu0 0.0
        %414 = vmatpush1.msra.mxu0 0.0
        %415 = vmatprep.subr.mxu0 0.0
        %416 = vmatpush1.msra.mxu0 0.0
        %417 = vmatprep.subr.mxu0 0.0
        %418 = vmatpush1.msra.mxu0 0.0
        %419 = vmatprep.subr.mxu0 0.0
        %420 = vmatpush1.msra.mxu0 0.0
        %421 = vmatprep.subr.mxu0 0.0
        %422 = vmatpush1.msra.mxu0 0.0
        %423 = vmatprep.subr.mxu0 0.0
        %424 = vmatpush1.msra.mxu0 0.0
        %425 = vmatprep.subr.mxu0 0.0
        %426 = vmatpush1.msra.mxu0 0.0
        %427 = vmatprep.subr.mxu0 0.0
        %428 = vmatpush1.msra.mxu0 0.0
        %429 = vmatprep.subr.mxu0 0.0
        %430 = vmatpush1.msra.mxu0 0.0
        %431 = vmatprep.subr.mxu0 0.0
        %432 = vmatpush1.msra.mxu0 0.0
        %433 = vmatprep.subr.mxu0 0.0
        %434 = vmatpush1.msra.mxu0 0.0
        %435 = vmatprep.subr.mxu0 0.0
        %436 = vmatpush1.msra.mxu0 0.0
        %437 = vmatprep.subr.mxu0 0.0
        %438 = vmatpush1.msra.mxu0 0.0
        %439 = vmatprep.subr.mxu0 0.0
        %440 = vmatpush1.msra.mxu0 0.0
        %441 = vmatprep.subr.mxu0 0.0
        %442 = vmatpush1.msra.mxu0 0.0
        %443 = vmatprep.subr.mxu0 0.0
        %444 = vmatpush1.msra.mxu0 0.0
        %445 = vmatprep.subr.mxu0 0.0
        %446 = vmatpush1.msra.mxu0 0.0
        %447 = vmatprep.subr.mxu0 0.0
        %448 = vmatpush1.msra.mxu0 0.0
        %449 = vmatprep.subr.mxu0 0.0
        %450 = vmatpush1.msra.mxu0 0.0
        %451 = vmatprep.subr.mxu0 0.0
        %452 = vmatpush1.msra.mxu0 0.0
        %453 = vmatprep.subr.mxu0 0.0
        %454 = vmatpush1.msra.mxu0 0.0
        %455 = vmatprep.subr.mxu0 0.0
        %456 = vmatpush1.msra.mxu0 0.0
        %457 = vmatprep.subr.mxu0 0.0
        %458 = vmatpush1.msra.mxu0 0.0
        %459 = vmatprep.mubr.f32.mxu0 0.0
        %460 = vmatmul.mubr.f32.gmra.mrb[0].mxu0 %v300
        %v461 = vpop.f32.mrb[0].mxu0
        %v462 = vadd.f32 0.0, %v461
        %v463 = vpop.f32.mrb[0].mxu0
        %464 = vmatprep.mubr.f32.mxu0 0.0
        %465 = vmatmul.mubr.f32.gmra.mrb[0].mxu0 %v303
        %v466 = vpop.f32.mrb[0].mxu0
        %v467 = vadd.f32 0.0, %v466
        %v468 = vpop.f32.mrb[0].mxu0
        %469 = vmatprep.mubr.f32.mxu0 0.0
        %470 = vmatmul.mubr.f32.gmra.mrb[0].mxu0 %v306
        %v471 = vpop.f32.mrb[0].mxu0
        %v472 = vadd.f32 0.0, %v471
        %v473 = vpop.f32.mrb[0].mxu0
        %474 = vmatprep.mubr.f32.mxu0 0.0
        %475 = vmatmul.mubr.f32.gmra.mrb[0].mxu0 %v309
        %v476 = vpop.f32.mrb[0].mxu0
        %v477 = vadd.f32 0.0, %v476
        %v478 = vpop.f32.mrb[0].mxu0
        %479 = vmatprep.mubr.f32.mxu0 0.0
        %480 = vmatmul.mubr.f32.gmra.mrb[0].mxu0 %v312
        %v481 = vpop.f32.mrb[0].mxu0
        %v482 = vadd.f32 0.0, %v481
        %v483 = vpop.f32.mrb[0].mxu0
        %484 = vmatprep.mubr.f32.mxu0 0.0
        %485 = vmatmul.mubr.f32.gmra.mrb[0].mxu0 %v315
        %v486 = vpop.f32.mrb[0].mxu0
        %v487 = vadd.f32 0.0, %v486
        %v488 = vpop.f32.mrb[0].mxu0
        %489 = vmatprep.mubr.f32.mxu0 0.0
        %490 = vmatmul.mubr.f32.gmra.mrb[0].mxu0 %v318
        %v491 = vpop.f32.mrb[0].mxu0
        %v492 = vadd.f32 0.0, %v491
        %v493 = vpop.f32.mrb[0].mxu0
        %494 = vmatprep.mubr.f32.mxu0 0.0
        %495 = vmatmul.mubr.f32.gmra.mrb[0].mxu0 %v321
        %v496 = vpop.f32.mrb[0].mxu0
        %v497 = vadd.f32 0.0, %v496
        %v498 = vpop.f32.mrb[0].mxu0
        %499 = vmatprep.mubr.f32.mxu0 0.0
        %500 = vmatmul.mubr.f32.gmra.mrb[0].mxu0 %v324
        %v501 = vpop.f32.mrb[0].mxu0
        %v502 = vadd.f32 0.0, %v501
        %v503 = vpop.f32.mrb[0].mxu0
        %504 = vmatprep.mubr.f32.mxu0 0.0
        %505 = vmatmul.mubr.f32.gmra.mrb[0].mxu0 %v327
        %v506 = vpop.f32.mrb[0].mxu0
        %v507 = vadd.f32 0.0, %v506
        %v508 = vpop.f32.mrb[0].mxu0
        %509 = vmatprep.mubr.f32.mxu0 0.0
        %510 = vmatmul.mubr.f32.gmra.mrb[0].mxu0 %v330
        %v511 = vpop.f32.mrb[0].mxu0
        %v512 = vadd.f32 0.0, %v511
        %v513 = vpop.f32.mrb[0].mxu0
        %514 = vmatprep.mubr.f32.mxu0 0.0
        %515 = vmatmul.mubr.f32.gmra.mrb[0].mxu0 %v333
        %v516 = vpop.f32.mrb[0].mxu0
        %v517 = vadd.f32 0.0, %v516
        %v518 = vpop.f32.mrb[0].mxu0
        %519 = vmatprep.mubr.f32.mxu0 0.0
        %520 = vmatmul.mubr.f32.gmra.mrb[0].mxu0 %v336
        %v521 = vpop.f32.mrb[0].mxu0
        %v522 = vadd.f32 0.0, %v521
        %v523 = vpop.f32.mrb[0].mxu0
        %524 = vmatprep.mubr.f32.mxu0 0.0
        %525 = vmatmul.mubr.f32.gmra.mrb[0].mxu0 %v339
        %v526 = vpop.f32.mrb[0].mxu0
        %v527 = vadd.f32 0.0, %v526
        %v528 = vpop.f32.mrb[0].mxu0
        %529 = vmatprep.mubr.f32.mxu0 0.0
        %530 = vmatmul.mubr.f32.gmra.mrb[0].mxu0 %v342
        %v531 = vpop.f32.mrb[0].mxu0
        %v532 = vadd.f32 0.0, %v531
        %v533 = vpop.f32.mrb[0].mxu0
        %534 = vmatprep.mubr.f32.mxu0 0.0
        %535 = vmatmul.mubr.f32.gmra.mrb[0].mxu0 %v345
        %v536 = vpop.f32.mrb[0].mxu0
        %v537 = vadd.f32 0.0, %v536
        %v538 = vpop.f32.mrb[0].mxu0
        %539 = vmatprep.mubr.f32.mxu0 0.0
        %540 = vmatmul.mubr.f32.gmra.mrb[0].mxu0 %v348
        %v541 = vpop.f32.mrb[0].mxu0
        %v542 = vadd.f32 0.0, %v541
        %v543 = vpop.f32.mrb[0].mxu0
        %544 = vmatprep.mubr.f32.mxu0 0.0
        %545 = vmatmul.mubr.f32.gmra.mrb[0].mxu0 %v351
        %v546 = vpop.f32.mrb[0].mxu0
        %v547 = vadd.f32 0.0, %v546
        %v548 = vpop.f32.mrb[0].mxu0
        %549 = vmatprep.mubr.f32.mxu0 0.0
        %550 = vmatmul.mubr.f32.gmra.mrb[0].mxu0 %v354
        %v551 = vpop.f32.mrb[0].mxu0
        %v552 = vadd.f32 0.0, %v551
        %v553 = vpop.f32.mrb[0].mxu0
        %554 = vmatprep.mubr.f32.mxu0 0.0
        %555 = vmatmul.mubr.f32.gmra.mrb[0].mxu0 %v357
        %v556 = vpop.f32.mrb[0].mxu0
        %v557 = vadd.f32 0.0, %v556
        %v558 = vpop.f32.mrb[0].mxu0
        %559 = vmatprep.mubr.f32.mxu0 0.0
        %560 = vmatmul.mubr.f32.gmra.mrb[0].mxu0 %v360
        %v561 = vpop.f32.mrb[0].mxu0
        %v562 = vadd.f32 0.0, %v561
        %v563 = vpop.f32.mrb[0].mxu0
        %564 = vmatprep.mubr.f32.mxu0 0.0
        %565 = vmatmul.mubr.f32.gmra.mrb[0].mxu0 %v363
        %v566 = vpop.f32.mrb[0].mxu0
        %v567 = vadd.f32 0.0, %v566
        %v568 = vpop.f32.mrb[0].mxu0
        %569 = vmatprep.mubr.f32.mxu0 0.0
        %570 = vmatmul.mubr.f32.gmra.mrb[0].mxu0 %v366
        %v571 = vpop.f32.mrb[0].mxu0
        %v572 = vadd.f32 0.0, %v571
        %v573 = vpop.f32.mrb[0].mxu0
        %574 = vmatprep.mubr.f32.mxu0 0.0
        %575 = vmatmul.mubr.f32.gmra.mrb[0].mxu0 %v369
        %v576 = vpop.f32.mrb[0].mxu0
        %v577 = vadd.f32 0.0, %v576
        %v578 = vpop.f32.mrb[0].mxu0
        %579 = vmatprep.mubr.f32.mxu0 0.0
        %580 = vmatmul.mubr.f32.gmra.mrb[0].mxu0 %v372
        %v581 = vpop.f32.mrb[0].mxu0
        %v582 = vadd.f32 0.0, %v581
        %v583 = vpop.f32.mrb[0].mxu0
        %584 = vmatprep.mubr.f32.mxu0 0.0
        %585 = vmatmul.mubr.f32.gmra.mrb[0].mxu0 %v375
        %v586 = vpop.f32.mrb[0].mxu0
        %v587 = vadd.f32 0.0, %v586
        %v588 = vpop.f32.mrb[0].mxu0
        %589 = vmatprep.mubr.f32.mxu0 0.0
        %590 = vmatmul.mubr.f32.gmra.mrb[0].mxu0 %v378
        %v591 = vpop.f32.mrb[0].mxu0
        %v592 = vadd.f32 0.0, %v591
        %v593 = vpop.f32.mrb[0].mxu0
        %594 = vmatprep.mubr.f32.mxu0 0.0
        %595 = vmatmul.mubr.f32.gmra.mrb[0].mxu0 %v381
        %v596 = vpop.f32.mrb[0].mxu0
        %v597 = vadd.f32 0.0, %v596
        %v598 = vpop.f32.mrb[0].mxu0
        %599 = vmatprep.mubr.f32.mxu0 0.0
        %600 = vmatmul.mubr.f32.gmra.mrb[0].mxu0 %v384
        %v601 = vpop.f32.mrb[0].mxu0
        %v602 = vadd.f32 0.0, %v601
        %v603 = vpop.f32.mrb[0].mxu0
        %604 = vmatprep.mubr.f32.mxu0 0.0
        %605 = vmatmul.mubr.f32.gmra.mrb[0].mxu0 %v387
        %v606 = vpop.f32.mrb[0].mxu0
        %v607 = vadd.f32 0.0, %v606
        %v608 = vpop.f32.mrb[0].mxu0
        %609 = vmatprep.mubr.f32.mxu0 0.0
        %610 = vmatmul.mubr.f32.gmra.mrb[0].mxu0 %v390
        %v611 = vpop.f32.mrb[0].mxu0
        %v612 = vadd.f32 0.0, %v611
        %v613 = vpop.f32.mrb[0].mxu0
        %614 = vmatprep.mubr.f32.mxu0 0.0
        %615 = vmatmul.mubr.f32.gmra.mrb[0].mxu0 %v393
        %v616 = vpop.f32.mrb[0].mxu0
        %v617 = vadd.f32 0.0, %v616
        %v618 = vpop.f32.mrb[0].mxu0
        %619 = vdwg.mxu0
        %v620 = vld [vmem:[%s232] sm:$0xff]
        %v621 = vld [vmem:[%s232 + $0x8] sm:$0xff]
        %v622 = vld [vmem:[%s232 + $0x10] sm:$0xff]
        %v623 = vld [vmem:[%s232 + $0x18] sm:$0xff]
        %v624 = vld [vmem:[%s232 + $0x20] sm:$0xff]
        %v625 = vld [vmem:[%s232 + $0x28] sm:$0xff]
        %v626 = vld [vmem:[%s232 + $0x30] sm:$0xff]
        %v627 = vld [vmem:[%s232 + $0x38] sm:$0xff]
        %v628 = vld [vmem:[%s232 + $0x40] sm:$0xff]
        %v629 = vld [vmem:[%s232 + $0x48] sm:$0xff]
        %v630 = vld [vmem:[%s232 + $0x50] sm:$0xff]
        %v631 = vld [vmem:[%s232 + $0x58] sm:$0xff]
        %v632 = vld [vmem:[%s232 + $0x60] sm:$0xff]
        %v633 = vld [vmem:[%s232 + $0x68] sm:$0xff]
        %v634 = vld [vmem:[%s232 + $0x70] sm:$0xff]
        %v635 = vld [vmem:[%s232 + $0x78] sm:$0xff]
        %v636 = vld [vmem:[%s208] sm:$0xff]
        %v637 = vld [vmem:[%s208 + $0x8] sm:$0xff]
        %v638 = vld [vmem:[%s208 + $0x10] sm:$0xff]
        %v639 = vld [vmem:[%s208 + $0x18] sm:$0xff]
        %v640 = vld [vmem:[%s208 + $0x20] sm:$0xff]
        %v641 = vld [vmem:[%s208 + $0x28] sm:$0xff]
        %v642 = vld [vmem:[%s208 + $0x30] sm:$0xff]
        %v643 = vld [vmem:[%s208 + $0x38] sm:$0xff]
        %v644 = vld [vmem:[%s208 + $0x40] sm:$0xff]
        %v645 = vld [vmem:[%s208 + $0x48] sm:$0xff]
        %v646 = vld [vmem:[%s208 + $0x50] sm:$0xff]
        %v647 = vld [vmem:[%s208 + $0x58] sm:$0xff]
        %v648 = vld [vmem:[%s208 + $0x60] sm:$0xff]
        %v649 = vld [vmem:[%s208 + $0x68] sm:$0xff]
        %v650 = vld [vmem:[%s208 + $0x70] sm:$0xff]
        %v651 = vld [vmem:[%s208 + $0x78] sm:$0xff]
        %v652 = vld [vmem:[%s208 + $0x80] sm:$0xff]
        %v653 = vld [vmem:[%s208 + $0x88] sm:$0xff]
        %v654 = vld [vmem:[%s208 + $0x90] sm:$0xff]
        %v655 = vld [vmem:[%s208 + $0x98] sm:$0xff]
        %v656 = vld [vmem:[%s208 + $0xa0] sm:$0xff]
        %v657 = vld [vmem:[%s208 + $0xa8] sm:$0xff]
        %v658 = vld [vmem:[%s208 + $0xb0] sm:$0xff]
        %v659 = vld [vmem:[%s208 + $0xb8] sm:$0xff]
        %v660 = vld [vmem:[%s208 + $0xc0] sm:$0xff]
        %v661 = vld [vmem:[%s208 + $0xc8] sm:$0xff]
        %v662 = vld [vmem:[%s208 + $0xd0] sm:$0xff]
        %v663 = vld [vmem:[%s208 + $0xd8] sm:$0xff]
        %v664 = vld [vmem:[%s208 + $0xe0] sm:$0xff]
        %v665 = vld [vmem:[%s208 + $0xe8] sm:$0xff]
        %v666 = vld [vmem:[%s208 + $0xf0] sm:$0xff]
        %v667 = vld [vmem:[%s208 + $0xf8] sm:$0xff]
        %668 = vmatprep.subr.mxu0 0.0
        %669 = vmatpush1.msra.mxu0 %v462
        %670 = vmatprep.subr.mxu0 0.0
        %671 = vmatpush1.msra.mxu0 %v467
        %672 = vmatprep.subr.mxu0 0.0
        %673 = vmatpush1.msra.mxu0 %v472
        %674 = vmatprep.subr.mxu0 0.0
        %675 = vmatpush1.msra.mxu0 %v477
        %676 = vmatprep.subr.mxu0 0.0
        %677 = vmatpush1.msra.mxu0 %v482
        %678 = vmatprep.subr.mxu0 0.0
        %679 = vmatpush1.msra.mxu0 %v487
        %680 = vmatprep.subr.mxu0 0.0
        %681 = vmatpush1.msra.mxu0 %v492
        %682 = vmatprep.subr.mxu0 0.0
        %683 = vmatpush1.msra.mxu0 %v497
        %684 = vmatprep.subr.mxu0 0.0
        %685 = vmatpush1.msra.mxu0 %v502
        %686 = vmatprep.subr.mxu0 0.0
        %687 = vmatpush1.msra.mxu0 %v507
        %688 = vmatprep.subr.mxu0 0.0
        %689 = vmatpush1.msra.mxu0 %v512
        %690 = vmatprep.subr.mxu0 0.0
        %691 = vmatpush1.msra.mxu0 %v517
        %692 = vmatprep.subr.mxu0 0.0
        %693 = vmatpush1.msra.mxu0 %v522
        %694 = vmatprep.subr.mxu0 0.0
        %695 = vmatpush1.msra.mxu0 %v527
        %696 = vmatprep.subr.mxu0 0.0
        %697 = vmatpush1.msra.mxu0 %v532
        %698 = vmatprep.subr.mxu0 0.0
        %699 = vmatpush1.msra.mxu0 %v537
        %700 = vmatprep.subr.mxu0 0.0
        %701 = vmatpush1.msra.mxu0 %v542
        %702 = vmatprep.subr.mxu0 0.0
        %703 = vmatpush1.msra.mxu0 %v547
        %704 = vmatprep.subr.mxu0 0.0
        %705 = vmatpush1.msra.mxu0 %v552
        %706 = vmatprep.subr.mxu0 0.0
        %707 = vmatpush1.msra.mxu0 %v557
        %708 = vmatprep.subr.mxu0 0.0
        %709 = vmatpush1.msra.mxu0 %v562
        %710 = vmatprep.subr.mxu0 0.0
        %711 = vmatpush1.msra.mxu0 %v567
        %712 = vmatprep.subr.mxu0 0.0
        %713 = vmatpush1.msra.mxu0 %v572
        %714 = vmatprep.subr.mxu0 0.0
        %715 = vmatpush1.msra.mxu0 %v577
        %716 = vmatprep.subr.mxu0 0.0
        %717 = vmatpush1.msra.mxu0 %v582
        %718 = vmatprep.subr.mxu0 0.0
        %719 = vmatpush1.msra.mxu0 %v587
        %720 = vmatprep.subr.mxu0 0.0
        %721 = vmatpush1.msra.mxu0 %v592
        %722 = vmatprep.subr.mxu0 0.0
        %723 = vmatpush1.msra.mxu0 %v597
        %724 = vmatprep.subr.mxu0 0.0
        %725 = vmatpush1.msra.mxu0 %v602
        %726 = vmatprep.subr.mxu0 0.0
        %727 = vmatpush1.msra.mxu0 %v607
        %728 = vmatprep.subr.mxu0 0.0
        %729 = vmatpush1.msra.mxu0 %v612
        %730 = vmatprep.subr.mxu0 0.0
        %731 = vmatpush1.msra.mxu0 %v617
        %732 = vmatprep.mubr.f32.mxu0 %v637
        %733 = vmatmul.mubr.f32.gmra.mrb[0].mxu0 %v636
        %v734 = vpop.f32.mrb[0].mxu0
        %v735 = vadd.f32 0.0, %v734
        %v736 = vpop.f32.mrb[0].mxu0
        %737 = vmatprep.mubr.f32.mxu0 %v639
        %738 = vmatmul.mubr.f32.gmra.mrb[0].mxu0 %v638
        %v739 = vpop.f32.mrb[0].mxu0
        %v740 = vadd.f32 0.0, %v739
        %v741 = vpop.f32.mrb[0].mxu0
        %742 = vmatprep.mubr.f32.mxu0 %v641
        %743 = vmatmul.mubr.f32.gmra.mrb[0].mxu0 %v640
        %v744 = vpop.f32.mrb[0].mxu0
        %v745 = vadd.f32 0.0, %v744
        %v746 = vpop.f32.mrb[0].mxu0
        %747 = vmatprep.mubr.f32.mxu0 %v643
        %748 = vmatmul.mubr.f32.gmra.mrb[0].mxu0 %v642
        %v749 = vpop.f32.mrb[0].mxu0
        %v750 = vadd.f32 0.0, %v749
        %v751 = vpop.f32.mrb[0].mxu0
        %752 = vmatprep.mubr.f32.mxu0 %v645
        %753 = vmatmul.mubr.f32.gmra.mrb[0].mxu0 %v644
        %v754 = vpop.f32.mrb[0].mxu0
        %v755 = vadd.f32 0.0, %v754
        %v756 = vpop.f32.mrb[0].mxu0
        %757 = vmatprep.mubr.f32.mxu0 %v647
        %758 = vmatmul.mubr.f32.gmra.mrb[0].mxu0 %v646
        %v759 = vpop.f32.mrb[0].mxu0
        %v760 = vadd.f32 0.0, %v759
        %v761 = vpop.f32.mrb[0].mxu0
        %762 = vmatprep.mubr.f32.mxu0 %v649
        %763 = vmatmul.mubr.f32.gmra.mrb[0].mxu0 %v648
        %v764 = vpop.f32.mrb[0].mxu0
        %v765 = vadd.f32 0.0, %v764
        %v766 = vpop.f32.mrb[0].mxu0
        %767 = vmatprep.mubr.f32.mxu0 %v651
        %768 = vmatmul.mubr.f32.gmra.mrb[0].mxu0 %v650
        %v769 = vpop.f32.mrb[0].mxu0
        %v770 = vadd.f32 0.0, %v769
        %v771 = vpop.f32.mrb[0].mxu0
        %772 = vmatprep.mubr.f32.mxu0 %v653
        %773 = vmatmul.mubr.f32.gmra.mrb[0].mxu0 %v652
        %v774 = vpop.f32.mrb[0].mxu0
        %v775 = vadd.f32 0.0, %v774
        %v776 = vpop.f32.mrb[0].mxu0
        %777 = vmatprep.mubr.f32.mxu0 %v655
        %778 = vmatmul.mubr.f32.gmra.mrb[0].mxu0 %v654
        %v779 = vpop.f32.mrb[0].mxu0
        %v780 = vadd.f32 0.0, %v779
        %v781 = vpop.f32.mrb[0].mxu0
        %782 = vmatprep.mubr.f32.mxu0 %v657
        %783 = vmatmul.mubr.f32.gmra.mrb[0].mxu0 %v656
        %v784 = vpop.f32.mrb[0].mxu0
        %v785 = vadd.f32 0.0, %v784
        %v786 = vpop.f32.mrb[0].mxu0
        %787 = vmatprep.mubr.f32.mxu0 %v659
        %788 = vmatmul.mubr.f32.gmra.mrb[0].mxu0 %v658
        %v789 = vpop.f32.mrb[0].mxu0
        %v790 = vadd.f32 0.0, %v789
        %v791 = vpop.f32.mrb[0].mxu0
        %792 = vmatprep.mubr.f32.mxu0 %v661
        %793 = vmatmul.mubr.f32.gmra.mrb[0].mxu0 %v660
        %v794 = vpop.f32.mrb[0].mxu0
        %v795 = vadd.f32 0.0, %v794
        %v796 = vpop.f32.mrb[0].mxu0
        %797 = vmatprep.mubr.f32.mxu0 %v663
        %798 = vmatmul.mubr.f32.gmra.mrb[0].mxu0 %v662
        %v799 = vpop.f32.mrb[0].mxu0
        %v800 = vadd.f32 0.0, %v799
        %v801 = vpop.f32.mrb[0].mxu0
        %802 = vmatprep.mubr.f32.mxu0 %v665
        %803 = vmatmul.mubr.f32.gmra.mrb[0].mxu0 %v664
        %v804 = vpop.f32.mrb[0].mxu0
        %v805 = vadd.f32 0.0, %v804
        %v806 = vpop.f32.mrb[0].mxu0
        %807 = vmatprep.mubr.f32.mxu0 %v667
        %808 = vmatmul.mubr.f32.gmra.mrb[0].mxu0 %v666
        %v809 = vpop.f32.mrb[0].mxu0
        %v810 = vadd.f32 0.0, %v809
        %v811 = vpop.f32.mrb[0].mxu0
        %812 = vdwg.mxu0
        %v813 = vadd.f32 %v620, %v735
        %v814 = vadd.f32 %v621, %v740
        %v815 = vadd.f32 %v622, %v745
        %v816 = vadd.f32 %v623, %v750
        %v817 = vadd.f32 %v624, %v755
        %v818 = vadd.f32 %v625, %v760
        %v819 = vadd.f32 %v626, %v765
        %v820 = vadd.f32 %v627, %v770
        %v821 = vadd.f32 %v628, %v775
        %v822 = vadd.f32 %v629, %v780
        %v823 = vadd.f32 %v630, %v785
        %v824 = vadd.f32 %v631, %v790
        %v825 = vadd.f32 %v632, %v795
        %v826 = vadd.f32 %v633, %v800
        %v827 = vadd.f32 %v634, %v805
        %v828 = vadd.f32 %v635, %v810
        %829 = vst [vmem:[%s232] sm:$0xff] %v813
        %830 = vst [vmem:[%s232 + $0x8] sm:$0xff] %v814
        %831 = vst [vmem:[%s232 + $0x10] sm:$0xff] %v815
        %832 = vst [vmem:[%s232 + $0x18] sm:$0xff] %v816
        %833 = vst [vmem:[%s232 + $0x20] sm:$0xff] %v817
        %834 = vst [vmem:[%s232 + $0x28] sm:$0xff] %v818
        %835 = vst [vmem:[%s232 + $0x30] sm:$0xff] %v819
        %836 = vst [vmem:[%s232 + $0x38] sm:$0xff] %v820
        %837 = vst [vmem:[%s232 + $0x40] sm:$0xff] %v821
        %838 = vst [vmem:[%s232 + $0x48] sm:$0xff] %v822
        %839 = vst [vmem:[%s232 + $0x50] sm:$0xff] %v823
        %840 = vst [vmem:[%s232 + $0x58] sm:$0xff] %v824
        %841 = vst [vmem:[%s232 + $0x60] sm:$0xff] %v825
        %842 = vst [vmem:[%s232 + $0x68] sm:$0xff] %v826
        %843 = vst [vmem:[%s232 + $0x70] sm:$0xff] %v827
        %844 = vst [vmem:[%s232 + $0x78] sm:$0xff] %v828
        // Predicated region
        $region45: #{tpu_custom_call.1} parent=35 // pred_check
          %p845 = pneg %p236
        $region46: #{tpu_custom_call.1} parent=35 // pred_check_branch
          %847 = sbr.rel (%p845) target = $region48
        $region47: #{tpu_custom_call.1} parent=35 // pred_region
          %v848 = vld [vmem:[%s232] sm:$0xff]
          %v849 = vld [vmem:[%s232 + $0x8] sm:$0xff]
          %v850 = vld [vmem:[%s232 + $0x10] sm:$0xff]
          %v851 = vld [vmem:[%s232 + $0x18] sm:$0xff]
          %v852 = vld [vmem:[%s232 + $0x20] sm:$0xff]
          %v853 = vld [vmem:[%s232 + $0x28] sm:$0xff]
          %v854 = vld [vmem:[%s232 + $0x30] sm:$0xff]
          %v855 = vld [vmem:[%s232 + $0x38] sm:$0xff]
          %v856 = vld [vmem:[%s232 + $0x40] sm:$0xff]
          %v857 = vld [vmem:[%s232 + $0x48] sm:$0xff]
          %v858 = vld [vmem:[%s232 + $0x50] sm:$0xff]
          %v859 = vld [vmem:[%s232 + $0x58] sm:$0xff]
          %v860 = vld [vmem:[%s232 + $0x60] sm:$0xff]
          %v861 = vld [vmem:[%s232 + $0x68] sm:$0xff]
          %v862 = vld [vmem:[%s232 + $0x70] sm:$0xff]
          %v863 = vld [vmem:[%s232 + $0x78] sm:$0xff]
          %v864 = vld [vmem:[%s3] sm:$0x1]
          %v866 = vlaneseq
          %v867 = vshrl.u32 %v866, 7
          %v868 = vsub.s32 0, %v867
          %v869 = vrot.slane %v864, %v868
          %v871 = vadd.f32 %v848, %v869
          %v872 = vadd.f32 %v849, %v869
          %v873 = vadd.f32 %v850, %v869
          %v874 = vadd.f32 %v851, %v869
          %v875 = vadd.f32 %v852, %v869
          %v876 = vadd.f32 %v853, %v869
          %v877 = vadd.f32 %v854, %v869
          %v878 = vadd.f32 %v855, %v869
          %v879 = vadd.f32 %v856, %v869
          %v880 = vadd.f32 %v857, %v869
          %v881 = vadd.f32 %v858, %v869
          %v882 = vadd.f32 %v859, %v869
          %v883 = vadd.f32 %v860, %v869
          %v884 = vadd.f32 %v861, %v869
          %v885 = vadd.f32 %v862, %v869
          %v886 = vadd.f32 %v863, %v869
          %v887 = vmax.f32 %v871, 0.0
          %v888 = vmax.f32 %v872, 0.0
          %v889 = vmax.f32 %v873, 0.0
          %v890 = vmax.f32 %v874, 0.0
          %v891 = vmax.f32 %v875, 0.0
          %v892 = vmax.f32 %v876, 0.0
          %v893 = vmax.f32 %v877, 0.0
          %v894 = vmax.f32 %v878, 0.0
          %v895 = vmax.f32 %v879, 0.0
          %v896 = vmax.f32 %v880, 0.0
          %v897 = vmax.f32 %v881, 0.0
          %v898 = vmax.f32 %v882, 0.0
          %v899 = vmax.f32 %v883, 0.0
          %v900 = vmax.f32 %v884, 0.0
          %v901 = vmax.f32 %v885, 0.0
          %v902 = vmax.f32 %v886, 0.0
          %903 = vst [vmem:[%s232] sm:$0xff] %v887
          %904 = vst [vmem:[%s232 + $0x8] sm:$0xff] %v888
          %905 = vst [vmem:[%s232 + $0x10] sm:$0xff] %v889
          %906 = vst [vmem:[%s232 + $0x18] sm:$0xff] %v890
          %907 = vst [vmem:[%s232 + $0x20] sm:$0xff] %v891
          %908 = vst [vmem:[%s232 + $0x28] sm:$0xff] %v892
          %909 = vst [vmem:[%s232 + $0x30] sm:$0xff] %v893
          %910 = vst [vmem:[%s232 + $0x38] sm:$0xff] %v894
          %911 = vst [vmem:[%s232 + $0x40] sm:$0xff] %v895
          %912 = vst [vmem:[%s232 + $0x48] sm:$0xff] %v896
          %913 = vst [vmem:[%s232 + $0x50] sm:$0xff] %v897
          %914 = vst [vmem:[%s232 + $0x58] sm:$0xff] %v898
          %915 = vst [vmem:[%s232 + $0x60] sm:$0xff] %v899
          %916 = vst [vmem:[%s232 + $0x68] sm:$0xff] %v900
          %917 = vst [vmem:[%s232 + $0x70] sm:$0xff] %v901
          %918 = vst [vmem:[%s232 + $0x78] sm:$0xff] %v902
        $region48: #{tpu_custom_call.1} parent=35 // pred_fallthru
          _
        %s919 = sand.u32 %s132, 1
        %s920 = scalar_lea.sflag [#allocation4], %s919
        %s921 = sand.u32 %s132, 1
        %s922 = smul.addr %s921, 128
        %s923 = scalar_lea.vmem [#allocation5], %s922
        // Predicated region
        $region49: #{tpu_custom_call.1} parent=35 // pred_check
          %p924 = pneg %p142
        $region50: #{tpu_custom_call.1} parent=35 // pred_check_branch
          %926 = sbr.rel (%p924) target = $region52
        $region51: #{tpu_custom_call.1} parent=35 // pred_region
          %s927 = smul.u32 16, %s25
          %s929 = ssub.s32 2048, 2048
          %930 = vsyncadd %s920, %s929
          %s931 = smul.addr %s927, 128
          %s932 = scalar_lea.hbm %s4, %s931
          %s933 = sshll.u32 %s923, 4
          %s934 = int_to_ptr.vmem [resolvable:$true] %s933
          %939 = dma.vmem_to_hbm [thread:$0]  %s934, 2048, %s932, %s920, 128, 128, 8
        $region52: #{tpu_custom_call.1} parent=35 // pred_fallthru
          _
      $region36: #{tpu_custom_call.1} parent=5 // pred_fallthru
        _
      %p940 = scmp.le.s32.totalorder 2, %s16
      // Predicated region
      $region53: #{tpu_custom_call.1} parent=5 // pred_check
        %p941 = pneg %p940
      $region54: #{tpu_custom_call.1} parent=5 // pred_check_branch
        %943 = sbr.rel (%p941) target = $region56
      $region55: #{tpu_custom_call.1} parent=5 // pred_region
        %s944 = ssub.s32 %s16, 2
        // Predicated region
        $region57: #{tpu_custom_call.1} parent=55 // pred_check
          %p945 = pneg %p148
        $region58: #{tpu_custom_call.1} parent=55 // pred_check_branch
          %947 = sbr.rel (%p945) target = $region60
        $region59: #{tpu_custom_call.1} parent=55 // pred_region
          %s948 = sand.u32 %s133, 1
          %s949 = scalar_lea.sflag [#allocation4], %s948
          %s950 = sand.u32 %s133, 1
          %s951 = smul.addr %s950, 128
          %s952 = scalar_lea.vmem [#allocation5], %s951
          %953 = dma.done %s949, 2048
        $region60: #{tpu_custom_call.1} parent=55 // pred_fallthru
          _
      $region56: #{tpu_custom_call.1} parent=5 // pred_fallthru
        _
    $region6: #{tpu_custom_call.1} parent=1 // loop_footer
      %s20 = sadd.s32 1, %s16
    $region7: #{tpu_custom_call.1} parent=1 // loop_footer_branch
      %15 = sbr.rel target = $region3
    $region8: #{tpu_custom_call.1} parent=1 // loop_exit
      _
    %954 = vsyncpa [#allocation3], 1
    %s955 = scalar_lea.sflag [#allocation3], 1
    %956 = vsyncpa %s955, 1
    %957 = vsyncpa [#allocation4], 1
    %s958 = scalar_lea.sflag [#allocation4], 1
    %959 = vsyncpa %s958, 1

</llo_original>
